<compile_context>
chip_gen: v5e
topology: v5e:2x2
jax: 0.10.0
libtpu: 0.0.40
codegen_flags: <defaults>
</compile_context>

<pallas_src>
import math

import jax
import jax.numpy as jnp
from jax.experimental import pallas as pl
from jax.experimental.pallas import tpu as pltpu


def _round_up(x, m):
    return ((x + m - 1) // m) * m


def _conv1x1_kernel(x_ref, w_ref, b_ref, o_ref):
    # x_ref: (1, C_in, TS)   w_ref: (C_out, C_in)   b_ref: (C_out, 1)
    # o_ref: (1, C_out, TS)
    acc = jnp.dot(w_ref[...], x_ref[0], preferred_element_type=jnp.float32)
    acc = acc + b_ref[...]  # bias broadcast over the spatial lanes (VPU)
    # Activation.IDENTITY -> no-op.
    # TODO(synk): fuse non-identity Activation variants (and activation_par
    # scaling) here as a VPU/EUP elementwise epilogue.
    o_ref[0] = acc.astype(o_ref.dtype)


def conv3d_fc_forward(x_ncdhw, weight, bias, *, tile_s=2048):
    """1x1x1 Conv3d forward (bias=True, identity activation).

    x_ncdhw: (N, C_in, D, H, W); weight: (C_out, C_in, 1, 1, 1); bias: (C_out,).
    Returns (N, C_out, D, H, W) in the input dtype.
    """
    N, C_in, D, H, W = x_ncdhw.shape
    C_out = weight.shape[0]
    S = D * H * W

    # NCDHW kept as-is: only flatten the contiguous spatial dims (free reshape).
    x3 = x_ncdhw.reshape(N, C_in, S)
    w2 = weight.reshape(C_out, C_in)      # PyTorch layout already (C_out, C_in)
    b2 = bias.reshape(C_out, 1)

    itemsize = jnp.dtype(x3.dtype).itemsize
    cin_p, cout_p = _round_up(C_in, 8), _round_up(C_out, 8)

    def vmem_bytes(t):
        # Double-buffered x/out tiles (sublane-padded) + resident weight/bias.
        lanes = _round_up(t, 128)
        tiles = 2 * itemsize * (cin_p + cout_p) * lanes
        resident = 4 * (cout_p * _round_up(C_in, 128) + cout_p * 128)
        return tiles + resident

    # --- pick the spatial tile (lane axis) -----------------------------------
    ts = max(128, min(_round_up(tile_s, 128), _round_up(S, 128)))
    while ts > 128 and vmem_bytes(ts) > 20 * 1024 * 1024:
        ts -= 128
    if ts >= S:
        # One exact block per batch element: block extent == array extent, so
        # no padding and no masked tail DMA at all.
        ts = S

    # Only the ragged *multi-tile* case needs a zero-pad on the lane axis.
    S_pad = S
    if S % ts != 0:
        S_pad = _round_up(S, ts)
        x3 = jnp.pad(x3, ((0, 0), (0, 0), (0, S_pad - S)))

    grid = (N, S_pad // ts)

    vmem_limit = int(min(max(2 * vmem_bytes(ts), 16 * 1024 * 1024),
                         48 * 1024 * 1024))

    cost = pl.CostEstimate(
        flops=2 * N * S * C_in * C_out,
        transcendentals=0,
        bytes_accessed=(N * C_in * S + C_out * C_in + C_out
                        + N * C_out * S) * itemsize,
    )

    out3 = pl.pallas_call(
        _conv1x1_kernel,
        out_shape=jax.ShapeDtypeStruct((N, C_out, S_pad), x3.dtype),
        grid_spec=pltpu.PrefetchScalarGridSpec(
            num_scalar_prefetch=0,
            grid=grid,
            in_specs=[
                pl.BlockSpec((1, C_in, ts), lambda n, j: (n, 0, j)),
                pl.BlockSpec((C_out, C_in), lambda n, j: (0, 0)),   # resident
                pl.BlockSpec((C_out, 1), lambda n, j: (0, 0)),      # resident
            ],
            out_specs=pl.BlockSpec((1, C_out, ts), lambda n, j: (n, 0, j)),
        ),
        compiler_params=pltpu.CompilerParams(
            dimension_semantics=("parallel", "parallel"),
            vmem_limit_bytes=vmem_limit,
        ),
        cost_estimate=cost,
    )(x3, w2, b2)

    if S_pad != S:
        out3 = out3[:, :, :S]
    return out3.reshape(N, C_out, D, H, W)


def init_params(key, in_channels, out_channels, dtype=jnp.float32):
    """Match Conv3dFCLayer.reset_parameters(): xavier_uniform weight, zero bias."""
    limit = math.sqrt(6.0 / (in_channels + out_channels))
    w = jax.random.uniform(
        key, (out_channels, in_channels, 1, 1, 1),
        minval=-limit, maxval=limit, dtype=dtype)
    b = jnp.zeros((out_channels,), dtype=dtype)
    return w, b


def _reference(x, weight, bias):
    C_out, C_in = weight.shape[0], weight.shape[1]
    return (jnp.einsum("ncdhw,oc->nodhw", x, weight.reshape(C_out, C_in))
            + bias.reshape(1, C_out, 1, 1, 1))


if __name__ == "__main__":
    key = jax.random.PRNGKey(0)
    k_x, k_w, k_x2 = jax.random.split(key, 3)

    N, C_in, C_out = 2, 4, 8
    weight, bias = init_params(k_w, C_in, C_out)

    # Case 1: D=H=W=8 -> S=512.  Default tile -> one exact block per n.
    D = H = W = 8
    x = jax.random.normal(k_x, (N, C_in, D, H, W), dtype=jnp.float32)
    ref = _reference(x, weight, bias)

    out = conv3d_fc_forward(x, weight, bias)
    jax.block_until_ready(out)
    assert out.shape == (N, C_out, D, H, W)
    assert jnp.allclose(out, ref, atol=1e-5, rtol=1e-5)

    # Case 1b: force tile_s=128 -> multi-tile grid (4 spatial tiles, divisible).
    out_b = conv3d_fc_forward(x, weight, bias, tile_s=128)
    jax.block_until_ready(out_b)
    assert jnp.allclose(out_b, ref, atol=1e-5, rtol=1e-5)

    # Case 2: ragged spatial size S = 5*6*7 = 210 -> single exact block (no pad).
    D2, H2, W2 = 5, 6, 7
    x2 = jax.random.normal(k_x2, (N, C_in, D2, H2, W2), dtype=jnp.float32)
    ref2 = _reference(x2, weight, bias)

    out2 = conv3d_fc_forward(x2, weight, bias)
    jax.block_until_ready(out2)
    assert out2.shape == (N, C_out, D2, H2, W2)
    assert jnp.allclose(out2, ref2, atol=1e-5, rtol=1e-5)

    # Case 2b: ragged + small tile -> exercises the padded multi-tile fallback.
    out2_b = conv3d_fc_forward(x2, weight, bias, tile_s=128)
    jax.block_until_ready(out2_b)
    assert jnp.allclose(out2_b, ref2, atol=1e-5, rtol=1e-5)

    print("KERNEL_OK")
</pallas_src>

<mosaic_0001>
module attributes {stable_mosaic.version = 11 : i64} {
  func.func @_conv1x1_kernel(%arg0: i32, %arg1: i32, %arg2: memref<1x4x512xf32, #tpu.memory_space<vmem>>, %arg3: memref<8x4xf32, #tpu.memory_space<vmem>>, %arg4: memref<8x1xf32, #tpu.memory_space<vmem>>, %arg5: memref<1x8x512xf32, #tpu.memory_space<vmem>>) attributes {dimension_semantics = [#tpu.dimension_semantics<parallel>, #tpu.dimension_semantics<parallel>], iteration_bounds = array<i64: 2, 1>, scalar_prefetch = 0 : i64, scratch_operands = 0 : i64, tpu.core_type = #tpu.core_type<tc>, window_params = [{transform_indices = @transform_0, window_bounds = array<i64: 1, 4, 512>}, {pipeline_mode = #tpu.pipeline_mode<synchronous>, transform_indices = @transform_1, window_bounds = array<i64: 8, 4>}, {pipeline_mode = #tpu.pipeline_mode<synchronous>, transform_indices = @transform_2, window_bounds = array<i64: 8, 1>}, {transform_indices = @transform_3, window_bounds = array<i64: 1, 8, 512>}]} {
    %c0 = arith.constant 0 : index
    %c0_0 = arith.constant 0 : index
    %0 = vector.load %arg3[%c0, %c0_0] : memref<8x4xf32, #tpu.memory_space<vmem>>, vector<8x4xf32>
    %c0_1 = arith.constant 0 : index
    %c0_2 = arith.constant 0 : index
    %c0_3 = arith.constant 0 : index
    %1 = vector.load %arg2[%c0_1, %c0_2, %c0_3] : memref<1x4x512xf32, #tpu.memory_space<vmem>>, vector<1x4x512xf32>
    %2 = vector.shape_cast %1 : vector<1x4x512xf32> to vector<4x512xf32>
    %cst = arith.constant dense<0.000000e+00> : vector<8x512xf32>
    %3 = tpu.matmul %0, %2, %cst {dimension_numbers = #tpu.dot_dimension_numbers<[1], [0], [0], [1], [0, 0, 1, 1], [], []>} : vector<8x4xf32>, vector<4x512xf32>, vector<8x512xf32> -> vector<8x512xf32>
    %c0_4 = arith.constant 0 : index
    %c0_5 = arith.constant 0 : index
    %4 = vector.load %arg4[%c0_4, %c0_5] : memref<8x1xf32, #tpu.memory_space<vmem>>, vector<8x1xf32>
    %5 = vector.broadcast %4 : vector<8x1xf32> to vector<8x512xf32>
    %6 = arith.addf %3, %5 : vector<8x512xf32>
    %c0_6 = arith.constant 0 : index
    %c0_7 = arith.constant 0 : index
    %c0_8 = arith.constant 0 : index
    %7 = vector.load %arg5[%c0_6, %c0_7, %c0_8] : memref<1x8x512xf32, #tpu.memory_space<vmem>>, vector<1x8x512xf32>
    %8 = vector.shape_cast %7 : vector<1x8x512xf32> to vector<8x512xf32>
    %9 = vector.shape_cast %6 : vector<8x512xf32> to vector<1x8x512xf32>
    tpu.vector_store %arg5[%c0_6, %c0_7, %c0_8], %9 {strides = array<i32>} : memref<1x8x512xf32, #tpu.memory_space<vmem>>, vector<1x8x512xf32>,
    return
  }
  func.func @transform_0(%arg0: i32, %arg1: i32) -> (i32, i32, i32) {
    %c0_i32 = arith.constant 0 : i32
    %c0_i32_0 = arith.constant 0 : i32
    return %arg0, %c0_i32, %arg1 : i32, i32, i32
  }
  func.func @transform_1(%arg0: i32, %arg1: i32) -> (i32, i32) {
    %c0_i32 = arith.constant 0 : i32
    %c0_i32_0 = arith.constant 0 : i32
    %c0_i32_1 = arith.constant 0 : i32
    return %c0_i32, %c0_i32_0 : i32, i32
  }
  func.func @transform_2(%arg0: i32, %arg1: i32) -> (i32, i32) {
    %c0_i32 = arith.constant 0 : i32
    %c0_i32_0 = arith.constant 0 : i32
    %c0_i32_1 = arith.constant 0 : i32
    return %c0_i32, %c0_i32_0 : i32, i32
  }
  func.func @transform_3(%arg0: i32, %arg1: i32) -> (i32, i32, i32) {
    %c0_i32 = arith.constant 0 : i32
    %c0_i32_0 = arith.constant 0 : i32
    return %arg0, %c0_i32, %arg1 : i32, i32, i32
  }
}

</mosaic_0001>

<llo_original>
// kernel: tpu_custom_call.1
$region0: #{tpu_custom_call.1}
  #allocation0 [shape = 'u32[]', space=smem, size = 0x4, offset = 0x4, fixed_abs, tag = 'smem constant byte address 0x4 - core index']
  #allocation1 [shape = 'u32[72,128]{1,0:T(1,128)}', space=vmem, size = 0x9000, scoped, tag = 'internal scratch']
  %s0 = inlined_call_operand.hbm [shape: f32[2,4,512], index: 0, kind: input, shape index: {}]
  %s1 = inlined_call_operand.vmem [shape: f32[8,4], index: 1, kind: input, shape index: {}]
  %s2 = inlined_call_operand.vmem [shape: f32[8,1], index: 2, kind: input, shape index: {}]
  %s3 = inlined_call_operand.hbm [shape: f32[2,8,512], index: 3, kind: output, shape index: {}]
  %s4 = sld [smem:[#allocation0]]
  $region49: #{tpu_custom_call.1} parent=0
    _
  %s6 = ssub.s32 1, %s4
  %s7 = scalar_select 0, %s6, %s4
  $region1: #{tpu_custom_call.1} parent=0
    #allocation2 [shape = 'u8[16384]{0}', space=vmem, size = 0x4000, scoped, tag = 'input window, operand 0']
    #allocation3 [shape = 's32[2]{0}', space=sflag, size = 0x8, scoped, tag = 'scoped memory for tpu_custom_call.1']
    #allocation4 [shape = 's32[2]{0}', space=sflag, size = 0x8, scoped, tag = 'scoped memory for tpu_custom_call.1']
    #allocation5 [shape = 'u8[32768]{0}', space=vmem, size = 0x8000, scoped, tag = 'output window, operand 0']
    %8 = vsyncpa [#allocation3], 0
    %s9 = scalar_lea.sflag [#allocation3], 1
    %10 = vsyncpa %s9, 0
    %11 = vsyncpa [#allocation4], 0
    %s12 = scalar_lea.sflag [#allocation4], 1
    %13 = vsyncpa %s12, 0
    loop: start=0, step=1, limit=4
    $region2: #{tpu_custom_call.1} parent=1 // loop_pre_header
      _
    $region3: #{tpu_custom_call.1} parent=1 // loop_header
      %s15 = sphi 0, %s19
      %p16 = scmp.ge.s32.totalorder %s15, 4
      %s22 = sphi 0, %s34
      %s23 = sphi 0, %s30
      %s24 = sphi 0, %s22
      %s25 = sphi 0, %s23
      %s26 = sphi 0, %s24
      %s27 = sphi 0, %s25
      %s39 = sphi 0, %s41
      %s42 = sphi 0, %s39
      %s43 = sphi 0, %s42
      %s59 = sphi 0, %s43
      %s63 = sphi 0, %s63
      %s65 = sphi 0, %s63
      %s66 = sphi 0, %s65
      %s80 = sphi 0, %s66
      %s84 = sphi 0, %s84
      %s86 = sphi 0, %s84
      %s87 = sphi 0, %s86
      %s101 = sphi 0, %s87
      %s109 = sphi 0, %s111
      %s112 = sphi 0, %s109
      %s113 = sphi 0, %s112
      %s129 = sphi 0, %s113
    $region4: #{tpu_custom_call.1} parent=1 // loop_header_branch
      %18 = sbr.rel (%p16) target = $region8
    $region5: #{tpu_custom_call.1} parent=1 // loop_body
      %s20 = ssub.s32 %s15, 1
      %s21 = ssub.s32 %s15, 2
      %s28 = sadd.s32 1, %s23
      %p29 = scmp.ge.s32.totalorder %s28, 1
      %s30 = scalar_select %p29, 0, %s28
      %s31 = sadd.s32 1, %s22
      %s32 = scalar_select %p29, %s31, %s22
      %p33 = scmp.ge.s32.totalorder %s32, 2
      %s34 = scalar_select %p33, 0, %s32
      %s35 = ssub.s32 %s22, %s34
      %s36 = ssub.s32 %s23, %s30
      %s37 = sor.u32 %s35, %s36
      %p38 = scmp.eq.s32.totalorder %s37, 0
      %s40 = sadd.s32 %s39, 1
      %s41 = scalar_select %p38, %s39, %s40
      %p44 = pneg %p38
      %p45 = scmp.eq.s32.totalorder %s15, 1
      %p46 = por %p44, %p45
      %p47 = scmp.ne.s32.totalorder %s39, %s42
      %p48 = scmp.eq.s32.totalorder %s15, 0
      %p49 = por %p47, %p48
      %p50 = scmp.ne.s32.totalorder %s39, %s42
      %p51 = scmp.eq.s32.totalorder %s20, 1
      %p52 = por %p50, %p51
      %p53 = scmp.ne.s32.totalorder %s42, %s43
      %p54 = scmp.eq.s32.totalorder %s20, 0
      %p55 = por %p53, %p54
      %p56 = scmp.ne.s32.totalorder %s42, %s43
      %p57 = scmp.eq.s32.totalorder %s21, 1
      %p58 = por %p56, %p57
      %p60 = scmp.ne.s32.totalorder %s43, %s59
      %p61 = scmp.eq.s32.totalorder %s21, 0
      %p62 = por %p60, %p61
      %s64 = sadd.s32 %s63, 1
      %p67 = scmp.eq.s32.totalorder %s15, 1
      %p68 = scmp.ne.s32.totalorder %s63, %s65
      %p69 = scmp.eq.s32.totalorder %s15, 0
      %p70 = por %p68, %p69
      %p71 = scmp.ne.s32.totalorder %s63, %s65
      %p72 = scmp.eq.s32.totalorder %s20, 1
      %p73 = por %p71, %p72
      %p74 = scmp.ne.s32.totalorder %s65, %s66
      %p75 = scmp.eq.s32.totalorder %s20, 0
      %p76 = por %p74, %p75
      %p77 = scmp.ne.s32.totalorder %s65, %s66
      %p78 = scmp.eq.s32.totalorder %s21, 1
      %p79 = por %p77, %p78
      %p81 = scmp.ne.s32.totalorder %s66, %s80
      %p82 = scmp.eq.s32.totalorder %s21, 0
      %p83 = por %p81, %p82
      %s85 = sadd.s32 %s84, 1
      %p88 = scmp.eq.s32.totalorder %s15, 1
      %p89 = scmp.ne.s32.totalorder %s84, %s86
      %p90 = scmp.eq.s32.totalorder %s15, 0
      %p91 = por %p89, %p90
      %p92 = scmp.ne.s32.totalorder %s84, %s86
      %p93 = scmp.eq.s32.totalorder %s20, 1
      %p94 = por %p92, %p93
      %p95 = scmp.ne.s32.totalorder %s86, %s87
      %p96 = scmp.eq.s32.totalorder %s20, 0
      %p97 = por %p95, %p96
      %p98 = scmp.ne.s32.totalorder %s86, %s87
      %p99 = scmp.eq.s32.totalorder %s21, 1
      %p100 = por %p98, %p99
      %p102 = scmp.ne.s32.totalorder %s87, %s101
      %p103 = scmp.eq.s32.totalorder %s21, 0
      %p104 = por %p102, %p103
      %s105 = ssub.s32 %s22, %s34
      %s106 = ssub.s32 %s23, %s30
      %s107 = sor.u32 %s105, %s106
      %p108 = scmp.eq.s32.totalorder %s107, 0
      %s110 = sadd.s32 %s109, 1
      %s111 = scalar_select %p108, %s109, %s110
      %p114 = pneg %p108
      %p115 = scmp.eq.s32.totalorder %s15, 1
      %p116 = por %p114, %p115
      %p117 = scmp.ne.s32.totalorder %s109, %s112
      %p118 = scmp.eq.s32.totalorder %s15, 0
      %p119 = por %p117, %p118
      %p120 = scmp.ne.s32.totalorder %s109, %s112
      %p121 = scmp.eq.s32.totalorder %s20, 1
      %p122 = por %p120, %p121
      %p123 = scmp.ne.s32.totalorder %s112, %s113
      %p124 = scmp.eq.s32.totalorder %s20, 0
      %p125 = por %p123, %p124
      %p126 = scmp.ne.s32.totalorder %s112, %s113
      %p127 = scmp.eq.s32.totalorder %s21, 1
      %p128 = por %p126, %p127
      %p130 = scmp.ne.s32.totalorder %s113, %s129
      %p131 = scmp.eq.s32.totalorder %s21, 0
      %p132 = por %p130, %p131
      %p133 = scmp.le.s32.totalorder 1, %s15
      %p134 = scmp.lt.s32.totalorder %s15, 3
      %p135 = pnand %p133, %p134
      %p136 = pneg %p135
      // Predicated region
      $region9: #{tpu_custom_call.1} parent=5 // pred_check
        _
      $region10: #{tpu_custom_call.1} parent=5 // pred_check_branch
        %138 = sbr.rel (%p135) target = $region12
      $region11: #{tpu_custom_call.1} parent=5 // pred_region
        %s139 = ssub.s32 %s15, 1
        // Predicated region
        $region13: #{tpu_custom_call.1} parent=11 // pred_check
          %p140 = pneg %p76
        $region14: #{tpu_custom_call.1} parent=11 // pred_check_branch
          %142 = sbr.rel (%p140) target = $region16
        $region15: #{tpu_custom_call.1} parent=11 // pred_region
          _
        $region16: #{tpu_custom_call.1} parent=11 // pred_fallthru
          _
        // Predicated region
        $region17: #{tpu_custom_call.1} parent=11 // pred_check
          %p143 = pneg %p97
        $region18: #{tpu_custom_call.1} parent=11 // pred_check_branch
          %145 = sbr.rel (%p143) target = $region20
        $region19: #{tpu_custom_call.1} parent=11 // pred_region
          _
        $region20: #{tpu_custom_call.1} parent=11 // pred_fallthru
          _
      $region12: #{tpu_custom_call.1} parent=5 // pred_fallthru
        _
      %p146 = scmp.lt.s32.totalorder %s15, 2
      // Predicated region
      $region21: #{tpu_custom_call.1} parent=5 // pred_check
        %p147 = pneg %p146
      $region22: #{tpu_custom_call.1} parent=5 // pred_check_branch
        %149 = sbr.rel (%p147) target = $region24
      $region23: #{tpu_custom_call.1} parent=5 // pred_region
        // Predicated region
        $region25: #{tpu_custom_call.1} parent=23 // pred_check
          %p150 = pneg %p49
        $region26: #{tpu_custom_call.1} parent=23 // pred_check_branch
          %152 = sbr.rel (%p150) target = $region28
        $region27: #{tpu_custom_call.1} parent=23 // pred_region
          %s153 = sand.u32 %s39, 1
          %s154 = scalar_lea.sflag [#allocation3], %s153
          %s155 = sand.u32 %s39, 1
          %s156 = smul.addr %s155, 16
          %s157 = scalar_lea.vmem [#allocation2], %s156
          %s158 = smul.u32 4, %s23
          %160 = vsyncadd %s154, 0
          %s161 = smul.addr %s22, 4
          %s162 = sadd.s32 %s158, %s161
          %s163 = smul.addr %s162, 4
          %s164 = scalar_lea.hbm %s0, %s163
          %s166 = sshll.u32 %s164, 4
          %s167 = int_to_ptr.hbm [resolvable:$true] %s166
          %s168 = sshll.u32 %s157, 4
          %s169 = int_to_ptr.vmem [resolvable:$true] %s168
          %171 = dma.hbm_to_vmem [thread:$0]  %s167, 256, %s169, %s154
        $region28: #{tpu_custom_call.1} parent=23 // pred_fallthru
          _
      $region24: #{tpu_custom_call.1} parent=5 // pred_fallthru
        _
      %p172 = scmp.le.s32.totalorder 1, %s15
      %p173 = scmp.lt.s32.totalorder %s15, 3
      %p174 = pnand %p172, %p173
      %p175 = pneg %p174
      // Predicated region
      $region29: #{tpu_custom_call.1} parent=5 // pred_check
        _
      $region30: #{tpu_custom_call.1} parent=5 // pred_check_branch
        %177 = sbr.rel (%p174) target = $region32
      $region31: #{tpu_custom_call.1} parent=5 // pred_region
        %s178 = ssub.s32 %s15, 1
        %s179 = sand.u32 %s42, 1
        %s180 = scalar_lea.sflag [#allocation3], %s179
        %s181 = sand.u32 %s42, 1
        %s182 = smul.addr %s181, 16
        %s183 = scalar_lea.vmem [#allocation2], %s182
        // Predicated region
        $region33: #{tpu_custom_call.1} parent=31 // pred_check
          %p184 = pneg %p55
        $region34: #{tpu_custom_call.1} parent=31 // pred_check_branch
          %186 = sbr.rel (%p184) target = $region36
        $region35: #{tpu_custom_call.1} parent=31 // pred_region
          %188 = dma.done %s180, 256
        $region36: #{tpu_custom_call.1} parent=31 // pred_fallthru
          _
        %s189 = sand.u32 %s42, 1
        %s190 = scalar_lea.sflag [#allocation3], %s189
        %s191 = sand.u32 %s42, 1
        %s192 = smul.addr %s191, 16
        %s193 = scalar_lea.vmem [#allocation2], %s192
        %p194 = pneg %p55
        %p195 = pneg %p52
        %p196 = pneg %p76
        %p197 = pneg %p73
        %p198 = pneg %p97
        %p199 = pneg %p94
        %p200 = pneg %p125
        %p201 = pneg %p122
        %s202 = sand.u32 %s112, 1
        %s203 = scalar_lea.sflag [#allocation4], %s202
        %s204 = sand.u32 %s112, 1
        %s205 = smul.addr %s204, 32
        %s206 = scalar_lea.vmem [#allocation5], %s205
        %s207 = smul.u32 4, %s25
        %s208 = smul.u32 4, %s25
        %v209 = vld [vmem:[%s1] sm:$0xff]
        %v210 = vld [vmem:[%s183] sm:$0xff]
        %v211 = vld [vmem:[%s183 + $0x8] sm:$0xff]
        %v212 = vld [vmem:[%s2] sm:$0xff]
        %214 = vset.pattern.permute.xlu0 0
        %215 = vperm.xlu0 %214, %v212
        %v216 = vpop.permute.xlu0 %215
        %220 = vst [vmem:[#allocation1] ss:$2 sm:$0xff] %v210
        %s221 = scalar_lea.vmem [#allocation1], 16
        %222 = vst [vmem:[%s221] ss:$2 sm:$0xff] %v211
        %v223 = vld.sshfl [vmem:[#allocation1] sm:$0xff pattern:$0x75316420]
        %v224 = vld.sshfl [vmem:[#allocation1 + $0x8] sm:$0xff pattern:$0x75316420]
        %v225 = vld.sshfl [vmem:[#allocation1 + $0x10] sm:$0xff pattern:$0x75316420]
        %v226 = vld.sshfl [vmem:[#allocation1 + $0x18] sm:$0xff pattern:$0x75316420]
        %vm227 = vcmask 31744
        %v229 = vsel %vm227, %v209, 0
        %vm231 = vcmask 1043456
        %v232 = vsel %vm231, %v223, 0
        %v234 = vsel %vm231, %v224, 0
        %v236 = vsel %vm231, %v225, 0
        %v238 = vsel %vm231, %v226, 0
        %240 = vmatpush.msra.mxu0 0.0
        %241 = vmatpush.msra.mxu0 0.0
        %242 = vmatpush.msra.mxu0 0.0
        %243 = vmatpush.msra.mxu0 0.0
        %244 = vmatpush.msra.mxu0 0.0
        %245 = vmatpush.msra.mxu0 0.0
        %246 = vmatpush.msra.mxu0 0.0
        %247 = vmatpush.msra.mxu0 0.0
        %248 = vmatpush.msra.mxu0 0.0
        %249 = vmatpush.msra.mxu0 0.0
        %250 = vmatpush.msra.mxu0 0.0
        %251 = vmatpush.msra.mxu0 0.0
        %252 = vmatpush.msra.mxu0 0.0
        %253 = vmatpush.msra.mxu0 0.0
        %254 = vmatpush.msra.mxu0 0.0
        %255 = vmatpush.msra.mxu0 %v232
        %256 = vmatmul.f32.gmra.mxu0 %v229
        %v257 = vpop.f32.mrf.mxu0
        %v258 = vadd.f32 %v216, %v257
        %259 = vdwg.mxu0
        %260 = vmatpush.msra.mxu0 0.0
        %261 = vmatpush.msra.mxu0 0.0
        %262 = vmatpush.msra.mxu0 0.0
        %263 = vmatpush.msra.mxu0 0.0
        %264 = vmatpush.msra.mxu0 0.0
        %265 = vmatpush.msra.mxu0 0.0
        %266 = vmatpush.msra.mxu0 0.0
        %267 = vmatpush.msra.mxu0 0.0
        %268 = vmatpush.msra.mxu0 0.0
        %269 = vmatpush.msra.mxu0 0.0
        %270 = vmatpush.msra.mxu0 0.0
        %271 = vmatpush.msra.mxu0 0.0
        %272 = vmatpush.msra.mxu0 0.0
        %273 = vmatpush.msra.mxu0 0.0
        %274 = vmatpush.msra.mxu0 0.0
        %275 = vmatpush.msra.mxu0 %v234
        %276 = vmatmul.f32.gmra.mxu0 %v229
        %v277 = vpop.f32.mrf.mxu0
        %v278 = vadd.f32 %v216, %v277
        %279 = vdwg.mxu0
        %280 = vmatpush.msra.mxu0 0.0
        %281 = vmatpush.msra.mxu0 0.0
        %282 = vmatpush.msra.mxu0 0.0
        %283 = vmatpush.msra.mxu0 0.0
        %284 = vmatpush.msra.mxu0 0.0
        %285 = vmatpush.msra.mxu0 0.0
        %286 = vmatpush.msra.mxu0 0.0
        %287 = vmatpush.msra.mxu0 0.0
        %288 = vmatpush.msra.mxu0 0.0
        %289 = vmatpush.msra.mxu0 0.0
        %290 = vmatpush.msra.mxu0 0.0
        %291 = vmatpush.msra.mxu0 0.0
        %292 = vmatpush.msra.mxu0 0.0
        %293 = vmatpush.msra.mxu0 0.0
        %294 = vmatpush.msra.mxu0 0.0
        %295 = vmatpush.msra.mxu0 %v236
        %296 = vmatmul.f32.gmra.mxu0 %v229
        %v297 = vpop.f32.mrf.mxu0
        %v298 = vadd.f32 %v216, %v297
        %299 = vdwg.mxu0
        %300 = vmatpush.msra.mxu0 0.0
        %301 = vmatpush.msra.mxu0 0.0
        %302 = vmatpush.msra.mxu0 0.0
        %303 = vmatpush.msra.mxu0 0.0
        %304 = vmatpush.msra.mxu0 0.0
        %305 = vmatpush.msra.mxu0 0.0
        %306 = vmatpush.msra.mxu0 0.0
        %307 = vmatpush.msra.mxu0 0.0
        %308 = vmatpush.msra.mxu0 0.0
        %309 = vmatpush.msra.mxu0 0.0
        %310 = vmatpush.msra.mxu0 0.0
        %311 = vmatpush.msra.mxu0 0.0
        %312 = vmatpush.msra.mxu0 0.0
        %313 = vmatpush.msra.mxu0 0.0
        %314 = vmatpush.msra.mxu0 0.0
        %315 = vmatpush.msra.mxu0 %v238
        %316 = vmatmul.f32.gmra.mxu0 %v229
        %v317 = vpop.f32.mrf.mxu0
        %v318 = vadd.f32 %v216, %v317
        %319 = vdwg.mxu0
        %320 = vst [vmem:[%s206] sm:$0xff] %v258
        %321 = vst [vmem:[%s206 + $0x8] sm:$0xff] %v278
        %322 = vst [vmem:[%s206 + $0x10] sm:$0xff] %v298
        %323 = vst [vmem:[%s206 + $0x18] sm:$0xff] %v318
        %s324 = sand.u32 %s112, 1
        %s325 = scalar_lea.sflag [#allocation4], %s324
        %s326 = sand.u32 %s112, 1
        %s327 = smul.addr %s326, 32
        %s328 = scalar_lea.vmem [#allocation5], %s327
        // Predicated region
        $region37: #{tpu_custom_call.1} parent=31 // pred_check
          %p329 = pneg %p122
        $region38: #{tpu_custom_call.1} parent=31 // pred_check_branch
          %331 = sbr.rel (%p329) target = $region40
        $region39: #{tpu_custom_call.1} parent=31 // pred_region
          %s332 = smul.u32 4, %s25
          %334 = vsyncadd %s325, 0
          %s335 = smul.addr %s24, 4
          %s336 = sadd.s32 %s332, %s335
          %s337 = smul.addr %s336, 8
          %s338 = scalar_lea.hbm %s3, %s337
          %s340 = sshll.u32 %s328, 4
          %s341 = int_to_ptr.vmem [resolvable:$true] %s340
          %s342 = sshll.u32 %s338, 4
          %s343 = int_to_ptr.hbm [resolvable:$true] %s342
          %345 = dma.vmem_to_hbm [thread:$0]  %s341, 512, %s343, %s325
        $region40: #{tpu_custom_call.1} parent=31 // pred_fallthru
          _
      $region32: #{tpu_custom_call.1} parent=5 // pred_fallthru
        _
      %p346 = scmp.le.s32.totalorder 2, %s15
      // Predicated region
      $region41: #{tpu_custom_call.1} parent=5 // pred_check
        %p347 = pneg %p346
      $region42: #{tpu_custom_call.1} parent=5 // pred_check_branch
        %349 = sbr.rel (%p347) target = $region44
      $region43: #{tpu_custom_call.1} parent=5 // pred_region
        %s350 = ssub.s32 %s15, 2
        // Predicated region
        $region45: #{tpu_custom_call.1} parent=43 // pred_check
          %p351 = pneg %p128
        $region46: #{tpu_custom_call.1} parent=43 // pred_check_branch
          %353 = sbr.rel (%p351) target = $region48
        $region47: #{tpu_custom_call.1} parent=43 // pred_region
          %s354 = sand.u32 %s113, 1
          %s355 = scalar_lea.sflag [#allocation4], %s354
          %s356 = sand.u32 %s113, 1
          %s357 = smul.addr %s356, 32
          %s358 = scalar_lea.vmem [#allocation5], %s357
          %360 = dma.done %s355, 512
        $region48: #{tpu_custom_call.1} parent=43 // pred_fallthru
          _
      $region44: #{tpu_custom_call.1} parent=5 // pred_fallthru
        _
    $region6: #{tpu_custom_call.1} parent=1 // loop_footer
      %s19 = sadd.s32 1, %s15
    $region7: #{tpu_custom_call.1} parent=1 // loop_footer_branch
      %14 = sbr.rel target = $region3
    $region8: #{tpu_custom_call.1} parent=1 // loop_exit
      _
    %361 = vsyncpa [#allocation3], 1
    %s362 = scalar_lea.sflag [#allocation3], 1
    %363 = vsyncpa %s362, 1
    %364 = vsyncpa [#allocation4], 1
    %s365 = scalar_lea.sflag [#allocation4], 1
    %366 = vsyncpa %s365, 1

</llo_original>
